<compile_context>
chip_gen: v6e
topology: v6e:2x2x1
jax: 0.10.0
libtpu: 0.0.40
codegen_flags: <defaults>
</compile_context>

<pallas_src>
import functools

import jax
import jax.numpy as jnp
from jax.experimental import pallas as pl
from jax.experimental.pallas import tpu as pltpu


class Config:
    d_model = 32
    d_ff = 64
    dropout = 0.1  # identity at inference


LANE = 128      # vreg lane width
SUBLANE = 8     # f32 sublane count (use 16 for bf16 activations)


def _round_up(x, m):
    return ((x + m - 1) // m) * m


def ffn_kernel(x_ref, w1_ref, b1_ref, w2_ref, b2_ref, scale_ref, o_ref):
    # x_ref:     (TM, Dp)            -- padded row tile
    # w1_ref:    (Dp, Fp),  b1_ref: (1, Fp)
    # w2_ref:    (Fp, Dp),  b2_ref: (1, Dp)
    # scale_ref: (1,) in SMEM        -- residual scale (scalar path)
    # o_ref:     (TM, Dp)            -- lane-dense (Dp multiple of 128)
    x = x_ref[...]
    h = jnp.dot(x, w1_ref[...], preferred_element_type=jnp.float32) + b1_ref[...]
    h = jnp.maximum(h, 0.0)                       # ReLU
    # dropout: eval-mode identity
    out = jnp.dot(h.astype(w2_ref.dtype), w2_ref[...],
                  preferred_element_type=jnp.float32) + b2_ref[...]
    o_ref[...] = (out * scale_ref[0]).astype(o_ref.dtype)


@functools.partial(jax.jit, static_argnames=("tile_m",))
def feed_forward(x, w1, b1, w2, b2, residual_scale, *, tile_m=None):
    """x: (batch, seq, d_model) float32 -> (batch, seq, d_model) float32.

    Weights are stored pre-transposed as (in_features, out_features), i.e.
    x @ W + b  ==  PyTorch's x @ W.T + b with W of shape (out, in).
    """
    B, S, D = x.shape
    F = w1.shape[1]
    M = B * S
    itemsize = jnp.dtype(x.dtype).itemsize

    # ---- lane-dense padding of the feature dims (free on the MXU) --------
    Dp = _round_up(D, LANE)
    Fp = _round_up(F, LANE)

    # ---- row tiling: multiple of 8, >= 2 grid steps when possible, <= 512
    if tile_m is None:
        tile_m = min(512, max(SUBLANE, pl.next_power_of_2(pl.cdiv(M, 2))))
    assert tile_m % SUBLANE == 0, "tile_m must be a multiple of 8 for f32"
    Mp = _round_up(M, tile_m)
    grid_m = Mp // tile_m

    # ---- zero-pad operands (zeros contribute nothing; sliced off below) ---
    x2d = x.reshape(M, D)
    x_p = jnp.zeros((Mp, Dp), x.dtype).at[:M, :D].set(x2d)
    w1_p = jnp.zeros((Dp, Fp), w1.dtype).at[:D, :F].set(w1)
    b1_p = jnp.zeros((1, Fp), b1.dtype).at[0, :F].set(b1)
    w2_p = jnp.zeros((Fp, Dp), w2.dtype).at[:F, :D].set(w2)
    b2_p = jnp.zeros((1, Dp), b2.dtype).at[0, :D].set(b2)
    scale = residual_scale.reshape(1).astype(jnp.float32)

    cost = pl.CostEstimate(
        flops=2 * Mp * (Dp * Fp + Fp * Dp),
        transcendentals=0,
        bytes_accessed=itemsize * (x_p.size + w1_p.size + b1_p.size
                                   + w2_p.size + b2_p.size + Mp * Dp),
    )

    out_p = pl.pallas_call(
        ffn_kernel,
        out_shape=jax.ShapeDtypeStruct((Mp, Dp), x.dtype),
        grid_spec=pltpu.PrefetchScalarGridSpec(
            num_scalar_prefetch=0,
            grid=(grid_m,),
            in_specs=[
                pl.BlockSpec((tile_m, Dp), lambda i: (i, 0)),   # x rows
                pl.BlockSpec((Dp, Fp), lambda i: (0, 0)),       # W1 (resident)
                pl.BlockSpec((1, Fp), lambda i: (0, 0)),        # b1
                pl.BlockSpec((Fp, Dp), lambda i: (0, 0)),       # W2 (resident)
                pl.BlockSpec((1, Dp), lambda i: (0, 0)),        # b2
                pl.BlockSpec(memory_space=pltpu.MemorySpace.SMEM),  # scale
            ],
            out_specs=pl.BlockSpec((tile_m, Dp), lambda i: (i, 0)),
        ),
        compiler_params=pltpu.CompilerParams(
            dimension_semantics=("parallel",),
            vmem_limit_bytes=32 * 1024 * 1024,
        ),
        cost_estimate=cost,
    )(x_p, w1_p, b1_p, w2_p, b2_p, scale)

    return out_p[:M, :D].reshape(B, S, D)


def reference(x, w1, b1, w2, b2, residual_scale):
    h = jnp.maximum(jnp.einsum("bsd,df->bsf", x, w1) + b1, 0.0)
    out = jnp.einsum("bsf,fd->bsd", h, w2) + b2
    return out * residual_scale[0]


if __name__ == "__main__":
    key = jax.random.PRNGKey(0)
    k_x, k_w1, k_b1, k_w2, k_b2 = jax.random.split(key, 5)

    B, S = 2, 8
    D, F = Config.d_model, Config.d_ff

    x = jax.random.normal(k_x, (B, S, D), dtype=jnp.float32)

    # Deterministic parameter init (PyTorch Linear-style uniform bounds).
    bound1 = 1.0 / (D ** 0.5)
    w1 = jax.random.uniform(k_w1, (D, F), jnp.float32, -bound1, bound1)  # (in, out)
    b1 = jax.random.uniform(k_b1, (F,), jnp.float32, -bound1, bound1)
    bound2 = 1.0 / (F ** 0.5)
    w2 = jax.random.uniform(k_w2, (F, D), jnp.float32, -bound2, bound2)  # (in, out)
    b2 = jax.random.uniform(k_b2, (D,), jnp.float32, -bound2, bound2)
    residual_scale = jnp.ones((1,), dtype=jnp.float32)

    out = feed_forward(x, w1, b1, w2, b2, residual_scale)
    out = jax.block_until_ready(out)

    ref = reference(x, w1, b1, w2, b2, residual_scale)
    assert out.shape == (B, S, D)
    assert jnp.allclose(out, ref, atol=1e-5, rtol=1e-5), "mismatch vs reference"

    print("KERNEL_OK")
</pallas_src>

<mosaic_0001>
module attributes {stable_mosaic.version = 11 : i64} {
  func.func @ffn_kernel(%arg0: i32, %arg1: memref<8x128xf32, #tpu.memory_space<vmem>>, %arg2: memref<128x128xf32, #tpu.memory_space<vmem>>, %arg3: memref<1x128xf32, #tpu.memory_space<vmem>>, %arg4: memref<128x128xf32, #tpu.memory_space<vmem>>, %arg5: memref<1x128xf32, #tpu.memory_space<vmem>>, %arg6: memref<1xf32, #tpu.memory_space<smem>>, %arg7: memref<8x128xf32, #tpu.memory_space<vmem>>) attributes {dimension_semantics = [#tpu.dimension_semantics<parallel>], iteration_bounds = array<i64: 2>, scalar_prefetch = 0 : i64, scratch_operands = 0 : i64, tpu.core_type = #tpu.core_type<tc>, window_params = [{transform_indices = @transform_0, window_bounds = array<i64: 8, 128>}, {pipeline_mode = #tpu.pipeline_mode<synchronous>, transform_indices = @transform_1, window_bounds = array<i64: 128, 128>}, {pipeline_mode = #tpu.pipeline_mode<synchronous>, transform_indices = @transform_2, window_bounds = array<i64: 1, 128>}, {pipeline_mode = #tpu.pipeline_mode<synchronous>, transform_indices = @transform_3, window_bounds = array<i64: 128, 128>}, {pipeline_mode = #tpu.pipeline_mode<synchronous>, transform_indices = @transform_4, window_bounds = array<i64: 1, 128>}, {transform_indices = @transform_5, window_bounds = array<i64: 1>}, {transform_indices = @transform_6, window_bounds = array<i64: 8, 128>}]} {
    %c0 = arith.constant 0 : index
    %c0_0 = arith.constant 0 : index
    %0 = vector.load %arg1[%c0, %c0_0] : memref<8x128xf32, #tpu.memory_space<vmem>>, vector<8x128xf32>
    %c0_1 = arith.constant 0 : index
    %c0_2 = arith.constant 0 : index
    %1 = vector.load %arg2[%c0_1, %c0_2] : memref<128x128xf32, #tpu.memory_space<vmem>>, vector<128x128xf32>
    %cst = arith.constant dense<0.000000e+00> : vector<8x128xf32>
    %2 = tpu.matmul %0, %1, %cst {dimension_numbers = #tpu.dot_dimension_numbers<[1], [0], [0], [1], [0, 0, 1, 1], [], []>} : vector<8x128xf32>, vector<128x128xf32>, vector<8x128xf32> -> vector<8x128xf32>
    %c0_3 = arith.constant 0 : index
    %c0_4 = arith.constant 0 : index
    %3 = vector.load %arg3[%c0_3, %c0_4] : memref<1x128xf32, #tpu.memory_space<vmem>>, vector<1x128xf32>
    %4 = vector.broadcast %3 : vector<1x128xf32> to vector<8x128xf32>
    %5 = arith.addf %2, %4 : vector<8x128xf32>
    %cst_5 = arith.constant 0.000000e+00 : f32
    %6 = vector.broadcast %cst_5 : f32 to vector<8x128xf32>
    %7 = arith.maximumf %5, %6 : vector<8x128xf32>
    %c0_6 = arith.constant 0 : index
    %c0_7 = arith.constant 0 : index
    %8 = vector.load %arg4[%c0_6, %c0_7] : memref<128x128xf32, #tpu.memory_space<vmem>>, vector<128x128xf32>
    %cst_8 = arith.constant dense<0.000000e+00> : vector<8x128xf32>
    %9 = tpu.matmul %7, %8, %cst_8 {dimension_numbers = #tpu.dot_dimension_numbers<[1], [0], [0], [1], [0, 0, 1, 1], [], []>} : vector<8x128xf32>, vector<128x128xf32>, vector<8x128xf32> -> vector<8x128xf32>
    %c0_9 = arith.constant 0 : index
    %c0_10 = arith.constant 0 : index
    %10 = vector.load %arg5[%c0_9, %c0_10] : memref<1x128xf32, #tpu.memory_space<vmem>>, vector<1x128xf32>
    %11 = vector.broadcast %10 : vector<1x128xf32> to vector<8x128xf32>
    %12 = arith.addf %9, %11 : vector<8x128xf32>
    %c0_11 = arith.constant 0 : index
    %13 = memref.load %arg6[%c0_11] : memref<1xf32, #tpu.memory_space<smem>>
    %14 = vector.broadcast %13 : f32 to vector<8x128xf32>
    %15 = arith.mulf %12, %14 : vector<8x128xf32>
    %c0_12 = arith.constant 0 : index
    %c0_13 = arith.constant 0 : index
    %16 = vector.load %arg7[%c0_12, %c0_13] : memref<8x128xf32, #tpu.memory_space<vmem>>, vector<8x128xf32>
    tpu.vector_store %arg7[%c0_12, %c0_13], %15 {strides = array<i32>} : memref<8x128xf32, #tpu.memory_space<vmem>>, vector<8x128xf32>,
    return
  }
  func.func @transform_0(%arg0: i32) -> (i32, i32) {
    %c0_i32 = arith.constant 0 : i32
    %c0_i32_0 = arith.constant 0 : i32
    return %arg0, %c0_i32 : i32, i32
  }
  func.func @transform_1(%arg0: i32) -> (i32, i32) {
    %c0_i32 = arith.constant 0 : i32
    %c0_i32_0 = arith.constant 0 : i32
    %c0_i32_1 = arith.constant 0 : i32
    return %c0_i32, %c0_i32_0 : i32, i32
  }
  func.func @transform_2(%arg0: i32) -> (i32, i32) {
    %c0_i32 = arith.constant 0 : i32
    %c0_i32_0 = arith.constant 0 : i32
    %c0_i32_1 = arith.constant 0 : i32
    return %c0_i32, %c0_i32_0 : i32, i32
  }
  func.func @transform_3(%arg0: i32) -> (i32, i32) {
    %c0_i32 = arith.constant 0 : i32
    %c0_i32_0 = arith.constant 0 : i32
    %c0_i32_1 = arith.constant 0 : i32
    return %c0_i32, %c0_i32_0 : i32, i32
  }
  func.func @transform_4(%arg0: i32) -> (i32, i32) {
    %c0_i32 = arith.constant 0 : i32
    %c0_i32_0 = arith.constant 0 : i32
    %c0_i32_1 = arith.constant 0 : i32
    return %c0_i32, %c0_i32_0 : i32, i32
  }
  func.func @transform_5(%arg0: i32) -> i32 {
    %c0_i32 = arith.constant 0 : i32
    %c0_i32_0 = arith.constant 0 : i32
    return %c0_i32 : i32
  }
  func.func @transform_6(%arg0: i32) -> (i32, i32) {
    %c0_i32 = arith.constant 0 : i32
    %c0_i32_0 = arith.constant 0 : i32
    return %arg0, %c0_i32 : i32, i32
  }
}

</mosaic_0001>

<llo_original>
// kernel: feed_forward.1
$region0: #{feed_forward.1}
  #allocation0 [shape = 'u32[]', space=smem, size = 0x4, offset = 0x4, fixed_abs, tag = 'smem constant byte address 0x4 - core index']
  #allocation1 [shape = 'u32[144,128]{1,0:T(1,128)}', space=vmem, size = 0x12000, scoped, tag = 'internal scratch']
  #allocation2 [shape = 'f32[1]{0:T(128)S(6)}', space=smem, size = 0x200, scoped, tag = 'scoped memory for feed_forward.1']
  %s0 = inlined_call_operand.vmem [shape: f32[16,128], index: 0, kind: input, shape index: {}]
  %s1 = inlined_call_operand.vmem [shape: f32[128,128], index: 1, kind: input, shape index: {}]
  %s2 = inlined_call_operand.vmem [shape: f32[1,128], index: 2, kind: input, shape index: {}]
  %s3 = inlined_call_operand.vmem [shape: f32[128,128], index: 3, kind: input, shape index: {}]
  %s4 = inlined_call_operand.vmem [shape: f32[1,128], index: 4, kind: input, shape index: {}]
  %s5 = inlined_call_operand.<no memory space> [shape: f32[1], index: 5, kind: input, shape index: {}]
  %s6 = inlined_call_operand.vmem [shape: f32[16,128], index: 6, kind: output, shape index: {}]
  %s7 = sld [smem:[#allocation0]]
  $region57: #{feed_forward.1} parent=0
    _
  %s9 = ssub.s32 1, %s7
  %s10 = scalar_select 0, %s9, %s7
  %11 = sst [smem:[#allocation2]] %s5
  loop: start=0, step=1, limit=4
  $region2: #{feed_forward.1} parent=0 // loop_pre_header
    _
  $region3: #{feed_forward.1} parent=0 // loop_header
    %s13 = sphi 0, %s17
    %p14 = scmp.ge.s32.totalorder %s13, 4
    %s23 = sphi 0, %s25
    %s26 = sphi 0, %s23
    %s27 = sphi 0, %s26
    %s43 = sphi 0, %s27
    %s47 = sphi 0, %s47
    %s49 = sphi 0, %s47
    %s50 = sphi 0, %s49
    %s64 = sphi 0, %s50
    %s68 = sphi 0, %s68
    %s70 = sphi 0, %s68
    %s71 = sphi 0, %s70
    %s85 = sphi 0, %s71
    %s89 = sphi 0, %s89
    %s91 = sphi 0, %s89
    %s92 = sphi 0, %s91
    %s106 = sphi 0, %s92
    %s110 = sphi 0, %s110
    %s112 = sphi 0, %s110
    %s113 = sphi 0, %s112
    %s127 = sphi 0, %s113
    %s131 = sphi 0, %s131
    %s133 = sphi 0, %s131
    %s134 = sphi 0, %s133
    %s148 = sphi 0, %s134
    %s154 = sphi 0, %s156
    %s157 = sphi 0, %s154
    %s158 = sphi 0, %s157
    %s174 = sphi 0, %s158
  $region4: #{feed_forward.1} parent=0 // loop_header_branch
    %16 = sbr.rel (%p14) target = $region8
  $region5: #{feed_forward.1} parent=0 // loop_body
    %s18 = ssub.s32 %s13, 1
    %s19 = ssub.s32 %s13, 2
    %s20 = sadd.s32 %s13, 1
    %s21 = ssub.s32 %s13, %s20
    %p22 = scmp.eq.s32.totalorder %s21, 0
    %s24 = sadd.s32 %s23, 1
    %s25 = scalar_select %p22, %s23, %s24
    %p28 = pneg %p22
    %p29 = scmp.eq.s32.totalorder %s13, 1
    %p30 = por %p28, %p29
    %p31 = scmp.ne.s32.totalorder %s23, %s26
    %p32 = scmp.eq.s32.totalorder %s13, 0
    %p33 = por %p31, %p32
    %p34 = scmp.ne.s32.totalorder %s23, %s26
    %p35 = scmp.eq.s32.totalorder %s18, 1
    %p36 = por %p34, %p35
    %p37 = scmp.ne.s32.totalorder %s26, %s27
    %p38 = scmp.eq.s32.totalorder %s18, 0
    %p39 = por %p37, %p38
    %p40 = scmp.ne.s32.totalorder %s26, %s27
    %p41 = scmp.eq.s32.totalorder %s19, 1
    %p42 = por %p40, %p41
    %p44 = scmp.ne.s32.totalorder %s27, %s43
    %p45 = scmp.eq.s32.totalorder %s19, 0
    %p46 = por %p44, %p45
    %s48 = sadd.s32 %s47, 1
    %p51 = scmp.eq.s32.totalorder %s13, 1
    %p52 = scmp.ne.s32.totalorder %s47, %s49
    %p53 = scmp.eq.s32.totalorder %s13, 0
    %p54 = por %p52, %p53
    %p55 = scmp.ne.s32.totalorder %s47, %s49
    %p56 = scmp.eq.s32.totalorder %s18, 1
    %p57 = por %p55, %p56
    %p58 = scmp.ne.s32.totalorder %s49, %s50
    %p59 = scmp.eq.s32.totalorder %s18, 0
    %p60 = por %p58, %p59
    %p61 = scmp.ne.s32.totalorder %s49, %s50
    %p62 = scmp.eq.s32.totalorder %s19, 1
    %p63 = por %p61, %p62
    %p65 = scmp.ne.s32.totalorder %s50, %s64
    %p66 = scmp.eq.s32.totalorder %s19, 0
    %p67 = por %p65, %p66
    %s69 = sadd.s32 %s68, 1
    %p72 = scmp.eq.s32.totalorder %s13, 1
    %p73 = scmp.ne.s32.totalorder %s68, %s70
    %p74 = scmp.eq.s32.totalorder %s13, 0
    %p75 = por %p73, %p74
    %p76 = scmp.ne.s32.totalorder %s68, %s70
    %p77 = scmp.eq.s32.totalorder %s18, 1
    %p78 = por %p76, %p77
    %p79 = scmp.ne.s32.totalorder %s70, %s71
    %p80 = scmp.eq.s32.totalorder %s18, 0
    %p81 = por %p79, %p80
    %p82 = scmp.ne.s32.totalorder %s70, %s71
    %p83 = scmp.eq.s32.totalorder %s19, 1
    %p84 = por %p82, %p83
    %p86 = scmp.ne.s32.totalorder %s71, %s85
    %p87 = scmp.eq.s32.totalorder %s19, 0
    %p88 = por %p86, %p87
    %s90 = sadd.s32 %s89, 1
    %p93 = scmp.eq.s32.totalorder %s13, 1
    %p94 = scmp.ne.s32.totalorder %s89, %s91
    %p95 = scmp.eq.s32.totalorder %s13, 0
    %p96 = por %p94, %p95
    %p97 = scmp.ne.s32.totalorder %s89, %s91
    %p98 = scmp.eq.s32.totalorder %s18, 1
    %p99 = por %p97, %p98
    %p100 = scmp.ne.s32.totalorder %s91, %s92
    %p101 = scmp.eq.s32.totalorder %s18, 0
    %p102 = por %p100, %p101
    %p103 = scmp.ne.s32.totalorder %s91, %s92
    %p104 = scmp.eq.s32.totalorder %s19, 1
    %p105 = por %p103, %p104
    %p107 = scmp.ne.s32.totalorder %s92, %s106
    %p108 = scmp.eq.s32.totalorder %s19, 0
    %p109 = por %p107, %p108
    %s111 = sadd.s32 %s110, 1
    %p114 = scmp.eq.s32.totalorder %s13, 1
    %p115 = scmp.ne.s32.totalorder %s110, %s112
    %p116 = scmp.eq.s32.totalorder %s13, 0
    %p117 = por %p115, %p116
    %p118 = scmp.ne.s32.totalorder %s110, %s112
    %p119 = scmp.eq.s32.totalorder %s18, 1
    %p120 = por %p118, %p119
    %p121 = scmp.ne.s32.totalorder %s112, %s113
    %p122 = scmp.eq.s32.totalorder %s18, 0
    %p123 = por %p121, %p122
    %p124 = scmp.ne.s32.totalorder %s112, %s113
    %p125 = scmp.eq.s32.totalorder %s19, 1
    %p126 = por %p124, %p125
    %p128 = scmp.ne.s32.totalorder %s113, %s127
    %p129 = scmp.eq.s32.totalorder %s19, 0
    %p130 = por %p128, %p129
    %s132 = sadd.s32 %s131, 1
    %p135 = scmp.eq.s32.totalorder %s13, 1
    %p136 = scmp.ne.s32.totalorder %s131, %s133
    %p137 = scmp.eq.s32.totalorder %s13, 0
    %p138 = por %p136, %p137
    %p139 = scmp.ne.s32.totalorder %s131, %s133
    %p140 = scmp.eq.s32.totalorder %s18, 1
    %p141 = por %p139, %p140
    %p142 = scmp.ne.s32.totalorder %s133, %s134
    %p143 = scmp.eq.s32.totalorder %s18, 0
    %p144 = por %p142, %p143
    %p145 = scmp.ne.s32.totalorder %s133, %s134
    %p146 = scmp.eq.s32.totalorder %s19, 1
    %p147 = por %p145, %p146
    %p149 = scmp.ne.s32.totalorder %s134, %s148
    %p150 = scmp.eq.s32.totalorder %s19, 0
    %p151 = por %p149, %p150
    %s152 = ssub.s32 %s13, %s20
    %p153 = scmp.eq.s32.totalorder %s152, 0
    %s155 = sadd.s32 %s154, 1
    %s156 = scalar_select %p153, %s154, %s155
    %p159 = pneg %p153
    %p160 = scmp.eq.s32.totalorder %s13, 1
    %p161 = por %p159, %p160
    %p162 = scmp.ne.s32.totalorder %s154, %s157
    %p163 = scmp.eq.s32.totalorder %s13, 0
    %p164 = por %p162, %p163
    %p165 = scmp.ne.s32.totalorder %s154, %s157
    %p166 = scmp.eq.s32.totalorder %s18, 1
    %p167 = por %p165, %p166
    %p168 = scmp.ne.s32.totalorder %s157, %s158
    %p169 = scmp.eq.s32.totalorder %s18, 0
    %p170 = por %p168, %p169
    %p171 = scmp.ne.s32.totalorder %s157, %s158
    %p172 = scmp.eq.s32.totalorder %s19, 1
    %p173 = por %p171, %p172
    %p175 = scmp.ne.s32.totalorder %s158, %s174
    %p176 = scmp.eq.s32.totalorder %s19, 0
    %p177 = por %p175, %p176
    %p178 = scmp.le.s32.totalorder 1, %s13
    %p179 = scmp.lt.s32.totalorder %s13, 3
    %p180 = pnand %p178, %p179
    %p181 = pneg %p180
    // Predicated region
    $region9: #{feed_forward.1} parent=5 // pred_check
      _
    $region10: #{feed_forward.1} parent=5 // pred_check_branch
      %183 = sbr.rel (%p180) target = $region12
    $region11: #{feed_forward.1} parent=5 // pred_region
      %s184 = ssub.s32 %s13, 1
      // Predicated region
      $region13: #{feed_forward.1} parent=11 // pred_check
        %p185 = pneg %p60
      $region14: #{feed_forward.1} parent=11 // pred_check_branch
        %187 = sbr.rel (%p185) target = $region16
      $region15: #{feed_forward.1} parent=11 // pred_region
        _
      $region16: #{feed_forward.1} parent=11 // pred_fallthru
        _
      // Predicated region
      $region17: #{feed_forward.1} parent=11 // pred_check
        %p188 = pneg %p81
      $region18: #{feed_forward.1} parent=11 // pred_check_branch
        %190 = sbr.rel (%p188) target = $region20
      $region19: #{feed_forward.1} parent=11 // pred_region
        _
      $region20: #{feed_forward.1} parent=11 // pred_fallthru
        _
      // Predicated region
      $region21: #{feed_forward.1} parent=11 // pred_check
        %p191 = pneg %p102
      $region22: #{feed_forward.1} parent=11 // pred_check_branch
        %193 = sbr.rel (%p191) target = $region24
      $region23: #{feed_forward.1} parent=11 // pred_region
        _
      $region24: #{feed_forward.1} parent=11 // pred_fallthru
        _
      // Predicated region
      $region25: #{feed_forward.1} parent=11 // pred_check
        %p194 = pneg %p123
      $region26: #{feed_forward.1} parent=11 // pred_check_branch
        %196 = sbr.rel (%p194) target = $region28
      $region27: #{feed_forward.1} parent=11 // pred_region
        _
      $region28: #{feed_forward.1} parent=11 // pred_fallthru
        _
      // Predicated region
      $region29: #{feed_forward.1} parent=11 // pred_check
        %p197 = pneg %p144
      $region30: #{feed_forward.1} parent=11 // pred_check_branch
        %199 = sbr.rel (%p197) target = $region32
      $region31: #{feed_forward.1} parent=11 // pred_region
        _
      $region32: #{feed_forward.1} parent=11 // pred_fallthru
        _
    $region12: #{feed_forward.1} parent=5 // pred_fallthru
      _
    %p200 = scmp.lt.s32.totalorder %s13, 2
    // Predicated region
    $region33: #{feed_forward.1} parent=5 // pred_check
      %p201 = pneg %p200
    $region34: #{feed_forward.1} parent=5 // pred_check_branch
      %203 = sbr.rel (%p201) target = $region36
    $region35: #{feed_forward.1} parent=5 // pred_region
      // Predicated region
      $region37: #{feed_forward.1} parent=35 // pred_check
        %p204 = pneg %p33
      $region38: #{feed_forward.1} parent=35 // pred_check_branch
        %206 = sbr.rel (%p204) target = $region40
      $region39: #{feed_forward.1} parent=35 // pred_region
        %p207 = scmp.lt.s32.totalorder %s13, 1
        %s208 = scalar_select %p207, %s13, 1
        %s209 = smul.addr %s208, 8
        %s210 = scalar_lea.vmem %s0, %s209
      $region40: #{feed_forward.1} parent=35 // pred_fallthru
        _
    $region36: #{feed_forward.1} parent=5 // pred_fallthru
      _
    %p211 = scmp.le.s32.totalorder 1, %s13
    %p212 = scmp.lt.s32.totalorder %s13, 3
    %p213 = pnand %p211, %p212
    %p214 = pneg %p213
    // Predicated region
    $region41: #{feed_forward.1} parent=5 // pred_check
      _
    $region42: #{feed_forward.1} parent=5 // pred_check_branch
      %216 = sbr.rel (%p213) target = $region44
    $region43: #{feed_forward.1} parent=5 // pred_region
      %s217 = ssub.s32 %s13, 1
      %p218 = scmp.lt.s32.totalorder %s18, 1
      %s219 = scalar_select %p218, %s18, 1
      %s220 = smul.addr %s219, 8
      %s221 = scalar_lea.vmem %s0, %s220
      %p222 = pneg %p39
      %p223 = pneg %p36
      %p224 = pneg %p60
      %p225 = pneg %p57
      %p226 = pneg %p81
      %p227 = pneg %p78
      %p228 = pneg %p102
      %p229 = pneg %p99
      %p230 = pneg %p123
      %p231 = pneg %p120
      %p232 = pneg %p144
      %p233 = pneg %p141
      %p234 = pneg %p170
      %p235 = pneg %p167
      %p236 = scmp.lt.s32.totalorder %s18, 1
      %s237 = scalar_select %p236, %s18, 1
      %s238 = smul.addr %s237, 8
      %s239 = scalar_lea.vmem %s6, %s238
      %p240 = scmp.lt.s32.totalorder %s18, 1
      %s241 = scalar_select %p240, %s18, 1
      %s242 = smul.addr %s241, 8
      %s243 = scalar_lea.vmem %s0, %s242
      %p244 = scmp.lt.s32.totalorder %s18, 1
      %s245 = scalar_select %p244, %s18, 1
      %s246 = smul.addr %s245, 8
      %s247 = scalar_lea.vmem %s6, %s246
      %v248 = vld [vmem:[%s243] sm:$0xff]
      %v249 = vld [vmem:[%s1] sm:$0xff]
      %v250 = vld [vmem:[%s1 + $0x8] sm:$0xff]
      %v251 = vld [vmem:[%s1 + $0x10] sm:$0xff]
      %v252 = vld [vmem:[%s1 + $0x18] sm:$0xff]
      %v253 = vld [vmem:[%s1 + $0x20] sm:$0xff]
      %v254 = vld [vmem:[%s1 + $0x28] sm:$0xff]
      %v255 = vld [vmem:[%s1 + $0x30] sm:$0xff]
      %v256 = vld [vmem:[%s1 + $0x38] sm:$0xff]
      %v257 = vld [vmem:[%s1 + $0x40] sm:$0xff]
      %v258 = vld [vmem:[%s1 + $0x48] sm:$0xff]
      %v259 = vld [vmem:[%s1 + $0x50] sm:$0xff]
      %v260 = vld [vmem:[%s1 + $0x58] sm:$0xff]
      %v261 = vld [vmem:[%s1 + $0x60] sm:$0xff]
      %v262 = vld [vmem:[%s1 + $0x68] sm:$0xff]
      %v263 = vld [vmem:[%s1 + $0x70] sm:$0xff]
      %v264 = vld [vmem:[%s1 + $0x78] sm:$0xff]
      %v265 = vld [vmem:[%s2] sm:$0x1]
      %v267 = vlaneseq
      %v268 = vshrl.u32 %v267, 7
      %v269 = vsub.s32 0, %v268
      %v270 = vrot.slane %v265, %v269
      %272 = vmatprep.subr.mxu0 0.0
      %273 = vmatpush1.msra.mxu0 %v264
      %274 = vmatprep.subr.mxu0 0.0
      %275 = vmatpush1.msra.mxu0 %v263
      %276 = vmatprep.subr.mxu0 0.0
      %277 = vmatpush1.msra.mxu0 %v262
      %278 = vmatprep.subr.mxu0 0.0
      %279 = vmatpush1.msra.mxu0 %v261
      %280 = vmatprep.subr.mxu0 0.0
      %281 = vmatpush1.msra.mxu0 %v260
      %282 = vmatprep.subr.mxu0 0.0
      %283 = vmatpush1.msra.mxu0 %v259
      %284 = vmatprep.subr.mxu0 0.0
      %285 = vmatpush1.msra.mxu0 %v258
      %286 = vmatprep.subr.mxu0 0.0
      %287 = vmatpush1.msra.mxu0 %v257
      %288 = vmatprep.subr.mxu0 0.0
      %289 = vmatpush1.msra.mxu0 %v256
      %290 = vmatprep.subr.mxu0 0.0
      %291 = vmatpush1.msra.mxu0 %v255
      %292 = vmatprep.subr.mxu0 0.0
      %293 = vmatpush1.msra.mxu0 %v254
      %294 = vmatprep.subr.mxu0 0.0
      %295 = vmatpush1.msra.mxu0 %v253
      %296 = vmatprep.subr.mxu0 0.0
      %297 = vmatpush1.msra.mxu0 %v252
      %298 = vmatprep.subr.mxu0 0.0
      %299 = vmatpush1.msra.mxu0 %v251
      %300 = vmatprep.subr.mxu0 0.0
      %301 = vmatpush1.msra.mxu0 %v250
      %302 = vmatprep.subr.mxu0 0.0
      %303 = vmatpush1.msra.mxu0 %v249
      %304 = vmatprep.subr.mxu0 0.0
      %305 = vmatpush2.msra.mxu0 0.0
      %306 = vmatprep.subr.mxu0 0.0
      %307 = vmatpush2.msra.mxu0 0.0
      %308 = vmatprep.subr.mxu0 0.0
      %309 = vmatpush2.msra.mxu0 0.0
      %310 = vmatprep.subr.mxu0 0.0
      %311 = vmatpush2.msra.mxu0 0.0
      %312 = vmatprep.subr.mxu0 0.0
      %313 = vmatpush2.msra.mxu0 0.0
      %314 = vmatprep.subr.mxu0 0.0
      %315 = vmatpush2.msra.mxu0 0.0
      %316 = vmatprep.subr.mxu0 0.0
      %317 = vmatpush2.msra.mxu0 0.0
      %318 = vmatprep.subr.mxu0 0.0
      %319 = vmatpush2.msra.mxu0 0.0
      %320 = vmatprep.subr.mxu0 0.0
      %321 = vmatpush2.msra.mxu0 0.0
      %322 = vmatprep.subr.mxu0 0.0
      %323 = vmatpush2.msra.mxu0 0.0
      %324 = vmatprep.subr.mxu0 0.0
      %325 = vmatpush2.msra.mxu0 0.0
      %326 = vmatprep.subr.mxu0 0.0
      %327 = vmatpush2.msra.mxu0 0.0
      %328 = vmatprep.subr.mxu0 0.0
      %329 = vmatpush2.msra.mxu0 0.0
      %330 = vmatprep.subr.mxu0 0.0
      %331 = vmatpush2.msra.mxu0 0.0
      %332 = vmatprep.subr.mxu0 0.0
      %333 = vmatpush2.msra.mxu0 0.0
      %334 = vmatprep.subr.mxu0 0.0
      %335 = vmatpush2.msra.mxu0 0.0
      %336 = vmatprep.mubr.f32.mxu0 0.0
      %337 = vmatmul.mubr.f32.gmra.mxu0 %v248
      %v338 = vpop.f32.mrf.mxu0
      %v339 = vadd.f32 %v270, %v338
      %v340 = vpop.f32.mrf.mxu0
      %341 = vdwg.mxu0
      %v342 = vmax.f32 %v339, 0.0
      %v343 = vld [vmem:[%s3] sm:$0xff]
      %v344 = vld [vmem:[%s3 + $0x8] sm:$0xff]
      %v345 = vld [vmem:[%s3 + $0x10] sm:$0xff]
      %v346 = vld [vmem:[%s3 + $0x18] sm:$0xff]
      %v347 = vld [vmem:[%s3 + $0x20] sm:$0xff]
      %v348 = vld [vmem:[%s3 + $0x28] sm:$0xff]
      %v349 = vld [vmem:[%s3 + $0x30] sm:$0xff]
      %v350 = vld [vmem:[%s3 + $0x38] sm:$0xff]
      %v351 = vld [vmem:[%s3 + $0x40] sm:$0xff]
      %v352 = vld [vmem:[%s3 + $0x48] sm:$0xff]
      %v353 = vld [vmem:[%s3 + $0x50] sm:$0xff]
      %v354 = vld [vmem:[%s3 + $0x58] sm:$0xff]
      %v355 = vld [vmem:[%s3 + $0x60] sm:$0xff]
      %v356 = vld [vmem:[%s3 + $0x68] sm:$0xff]
      %v357 = vld [vmem:[%s3 + $0x70] sm:$0xff]
      %v358 = vld [vmem:[%s3 + $0x78] sm:$0xff]
      %v359 = vld [vmem:[%s4] sm:$0x1]
      %v361 = vlaneseq
      %v362 = vshrl.u32 %v361, 7
      %v363 = vsub.s32 0, %v362
      %v364 = vrot.slane %v359, %v363
      %366 = vmatprep.subr.mxu0 0.0
      %367 = vmatpush1.msra.mxu0 %v358
      %368 = vmatprep.subr.mxu0 0.0
      %369 = vmatpush1.msra.mxu0 %v357
      %370 = vmatprep.subr.mxu0 0.0
      %371 = vmatpush1.msra.mxu0 %v356
      %372 = vmatprep.subr.mxu0 0.0
      %373 = vmatpush1.msra.mxu0 %v355
      %374 = vmatprep.subr.mxu0 0.0
      %375 = vmatpush1.msra.mxu0 %v354
      %376 = vmatprep.subr.mxu0 0.0
      %377 = vmatpush1.msra.mxu0 %v353
      %378 = vmatprep.subr.mxu0 0.0
      %379 = vmatpush1.msra.mxu0 %v352
      %380 = vmatprep.subr.mxu0 0.0
      %381 = vmatpush1.msra.mxu0 %v351
      %382 = vmatprep.subr.mxu0 0.0
      %383 = vmatpush1.msra.mxu0 %v350
      %384 = vmatprep.subr.mxu0 0.0
      %385 = vmatpush1.msra.mxu0 %v349
      %386 = vmatprep.subr.mxu0 0.0
      %387 = vmatpush1.msra.mxu0 %v348
      %388 = vmatprep.subr.mxu0 0.0
      %389 = vmatpush1.msra.mxu0 %v347
      %390 = vmatprep.subr.mxu0 0.0
      %391 = vmatpush1.msra.mxu0 %v346
      %392 = vmatprep.subr.mxu0 0.0
      %393 = vmatpush1.msra.mxu0 %v345
      %394 = vmatprep.subr.mxu0 0.0
      %395 = vmatpush1.msra.mxu0 %v344
      %396 = vmatprep.subr.mxu0 0.0
      %397 = vmatpush1.msra.mxu0 %v343
      %398 = vmatprep.subr.mxu0 0.0
      %399 = vmatpush2.msra.mxu0 0.0
      %400 = vmatprep.subr.mxu0 0.0
      %401 = vmatpush2.msra.mxu0 0.0
      %402 = vmatprep.subr.mxu0 0.0
      %403 = vmatpush2.msra.mxu0 0.0
      %404 = vmatprep.subr.mxu0 0.0
      %405 = vmatpush2.msra.mxu0 0.0
      %406 = vmatprep.subr.mxu0 0.0
      %407 = vmatpush2.msra.mxu0 0.0
      %408 = vmatprep.subr.mxu0 0.0
      %409 = vmatpush2.msra.mxu0 0.0
      %410 = vmatprep.subr.mxu0 0.0
      %411 = vmatpush2.msra.mxu0 0.0
      %412 = vmatprep.subr.mxu0 0.0
      %413 = vmatpush2.msra.mxu0 0.0
      %414 = vmatprep.subr.mxu0 0.0
      %415 = vmatpush2.msra.mxu0 0.0
      %416 = vmatprep.subr.mxu0 0.0
      %417 = vmatpush2.msra.mxu0 0.0
      %418 = vmatprep.subr.mxu0 0.0
      %419 = vmatpush2.msra.mxu0 0.0
      %420 = vmatprep.subr.mxu0 0.0
      %421 = vmatpush2.msra.mxu0 0.0
      %422 = vmatprep.subr.mxu0 0.0
      %423 = vmatpush2.msra.mxu0 0.0
      %424 = vmatprep.subr.mxu0 0.0
      %425 = vmatpush2.msra.mxu0 0.0
      %426 = vmatprep.subr.mxu0 0.0
      %427 = vmatpush2.msra.mxu0 0.0
      %428 = vmatprep.subr.mxu0 0.0
      %429 = vmatpush2.msra.mxu0 0.0
      %430 = vmatprep.mubr.f32.mxu0 0.0
      %431 = vmatmul.mubr.f32.gmra.mxu0 %v342
      %v432 = vpop.f32.mrf.mxu0
      %v433 = vadd.f32 %v364, %v432
      %v434 = vpop.f32.mrf.mxu0
      %435 = vdwg.mxu0
      %s436 = sld [smem:[#allocation2]]
      %v437 = vstv %s436
      %v438 = vmul.f32 %v433, %v437
      %439 = vst [vmem:[%s247] sm:$0xff] %v438
      %p440 = scmp.lt.s32.totalorder %s18, 1
      %s441 = scalar_select %p440, %s18, 1
      %s442 = smul.addr %s441, 8
      %s443 = scalar_lea.vmem %s6, %s442
      // Predicated region
      $region45: #{feed_forward.1} parent=43 // pred_check
        %p444 = pneg %p167
      $region46: #{feed_forward.1} parent=43 // pred_check_branch
        %446 = sbr.rel (%p444) target = $region48
      $region47: #{feed_forward.1} parent=43 // pred_region
        _
      $region48: #{feed_forward.1} parent=43 // pred_fallthru
        _
    $region44: #{feed_forward.1} parent=5 // pred_fallthru
      _
    %p447 = scmp.le.s32.totalorder 2, %s13
    // Predicated region
    $region49: #{feed_forward.1} parent=5 // pred_check
      %p448 = pneg %p447
    $region50: #{feed_forward.1} parent=5 // pred_check_branch
      %450 = sbr.rel (%p448) target = $region52
    $region51: #{feed_forward.1} parent=5 // pred_region
      %s451 = ssub.s32 %s13, 2
      // Predicated region
      $region53: #{feed_forward.1} parent=51 // pred_check
        %p452 = pneg %p173
      $region54: #{feed_forward.1} parent=51 // pred_check_branch
        %454 = sbr.rel (%p452) target = $region56
      $region55: #{feed_forward.1} parent=51 // pred_region
        %p455 = scmp.lt.s32.totalorder %s19, 1
        %s456 = scalar_select %p455, %s19, 1
        %s457 = smul.addr %s456, 8
        %s458 = scalar_lea.vmem %s6, %s457
      $region56: #{feed_forward.1} parent=51 // pred_fallthru
        _
    $region52: #{feed_forward.1} parent=5 // pred_fallthru
      _
  $region6: #{feed_forward.1} parent=0 // loop_footer
    %s17 = sadd.s32 1, %s13
  $region7: #{feed_forward.1} parent=0 // loop_footer_branch
    %12 = sbr.rel target = $region3
  $region8: #{feed_forward.1} parent=0 // loop_exit
    _

</llo_original>
